<compile_context>
chip_gen: v5e
topology: v5e:2x2
jax: 0.10.0
libtpu: 0.0.40
codegen_flags: <defaults>
</compile_context>

<pallas_src>
import functools

import jax
import jax.numpy as jnp
from jax.experimental import pallas as pl
from jax.experimental.pallas import tpu as pltpu

D_MODEL = 32
D_K = 8
D_V = 8
N_HEADS = 4
D_FF = 128
LN_EPS = 1e-5


def _layernorm(x):
    # nn.LayerNorm(d_model) is constructed fresh inside forward() -> weight=1, bias=0.
    mean = jnp.mean(x, axis=-1, keepdims=True)
    var = jnp.mean((x - mean) ** 2, axis=-1, keepdims=True)
    return (x - mean) * jax.lax.rsqrt(var + LN_EPS)


def encoder_layer_kernel(
    lens_ref,                        # SMEM (scalar prefetch): (B,) int32 valid lengths
    x_ref,                           # (B*S, D_MODEL) f32
    w_ref, b_ref,                    # (32,128)=[wq|wk|wv|wt], (1,128)=[bq|bk|bv|bt]
    wf1_ref, bf1_ref, wf2_ref, bf2_ref,
    out_ref,                         # (B*S, 2*D_MODEL): [encoder_out | self_attn]
    *, batch, seq,
):
    B, S = batch, seq
    H, DK, DV = N_HEADS, D_K, D_V
    x = x_ref[...]                                   # (B*S, 32)

    # ---- fused QKV(+T) projection: ONE MXU push for q, k, v ---------------------
    w_all = w_ref[...]                               # (32, 128)
    b_all = b_ref[...]                               # (1, 128)
    qkvt = jnp.dot(x, w_all, preferred_element_type=jnp.float32) + b_all
    q = qkvt[:, 0:H * DK] * (1.0 / jnp.sqrt(jnp.float32(DK)))   # fold 1/sqrt(d_k) into q
    k = qkvt[:, H * DK:2 * H * DK]
    v = qkvt[:, 2 * H * DK:2 * H * DK + H * DV]
    # lanes 96:128 of `qkvt` (x @ wt) are unused; wt/bt are applied to ctx below.
    wt = w_all[:, 3 * H * DK:]
    bt = b_all[:, 3 * H * DK:]

    # Batch-major views: leading-dim split only, lane layout unchanged.
    q3 = q.reshape(B, S, H * DK)
    k3 = k.reshape(B, S, H * DK)
    v3 = v.reshape(B, S, H * DV)

    # ---- all heads in one batched matmul pair (block-diagonal head mask) --------
    # head_blk[h*S + k, h'*DK + d] = 1 iff h == h'   (D_K == D_V here).
    # Built from iota + compares only (no integer div / mod) for safe lowering.
    ccol = jax.lax.broadcasted_iota(jnp.int32, (S, H * DK), 1)
    head_blk = jnp.concatenate(
        [jnp.where((ccol >= h * DK) & (ccol < (h + 1) * DK),
                   jnp.float32(1.0), jnp.float32(0.0)) for h in range(H)],
        axis=0)                                      # (H*S, H*DK) == (32, 32)

    # K_bd[b, h*S+k, h'*DK+d] = k3[b,k,h*DK+d] if h==h' else 0   (same for V_bd)
    k_bd = jnp.concatenate([k3] * H, axis=1) * head_blk          # (B, H*S, H*DK)
    v_bd = jnp.concatenate([v3] * H, axis=1) * head_blk          # (B, H*S, H*DV)

    # scores[b, q, h*S + k] = <q_h[b,q,:], k_h[b,k,:]> / sqrt(d_k)
    scores = jnp.einsum('bqd,bkd->bqk', q3, k_bd,
                        preferred_element_type=jnp.float32)      # (B, S, H*S)

    # ---- additive key-padding bias rebuilt from SMEM lengths, shape (B,1,H*S) ---
    # NOTE: assumes a key-padding mask (constant across query rows) with a contiguous
    # valid prefix — which is exactly what this encoder's pad mask is.
    col = jax.lax.broadcasted_iota(jnp.int32, (1, 1, S), 2)
    bias_s = jnp.concatenate(
        [jnp.where(col < lens_ref[b], jnp.float32(0.0), jnp.float32(-1e9))
         for b in range(B)], axis=0)                              # (B, 1, S)
    bias = jnp.concatenate([bias_s] * H, axis=2)                  # (B, 1, H*S)
    scores = scores + bias                                        # broadcast over queries

    # ---- softmax: one global row max (constant shift within each head segment) --
    m = jnp.max(scores, axis=-1, keepdims=True)                   # (B, S, 1)
    p = jnp.exp(scores - m)                                       # unnormalized probs

    # ctx_unnorm[b,q,h*DV+d] = sum_k p[b,q,h*S+k] * v[b,k,h*DV+d]
    ctx_un = jnp.einsum('bqk,bkd->bqd', p, v_bd,
                        preferred_element_type=jnp.float32)       # (B, S, H*DV)

    # Per-head denominator, already broadcast across each head's DV lanes, then
    # normalize AFTER the PV matmul (touches (B*S, H*DV), not (B,S,S)).
    p2 = p.reshape(B * S, H * S)
    denom = jnp.dot(p2, head_blk, preferred_element_type=jnp.float32)   # (B*S, H*DV)
    ctx = ctx_un.reshape(B * S, H * DV) * pl.reciprocal(denom, approx=False)

    # ---- output projection + residual + LayerNorm --------------------------------
    attn_out = jnp.dot(ctx, wt, preferred_element_type=jnp.float32) + bt
    y1 = _layernorm(attn_out + x)

    # ---- FFN + residual with the ORIGINAL inputs_emb (as in the PyTorch module) --
    hdn = jnp.dot(y1, wf1_ref[...], preferred_element_type=jnp.float32) + bf1_ref[...]
    hdn = jnp.maximum(hdn, 0.0)
    ffn = jnp.dot(hdn, wf2_ref[...], preferred_element_type=jnp.float32) + bf2_ref[...]
    out = _layernorm(x + ffn)

    # ---- single lane-packed store: [encoder_out | self_attn] ---------------------
    out_ref[...] = jnp.concatenate([out, ctx], axis=-1)           # (B*S, 64)


def encoder_layer(x, pad_attn_mask, params):
    """x: (B, S, d_model) f32; pad_attn_mask: (B, S, S) bool, True == masked key."""
    B, S, D = x.shape
    assert D == D_MODEL
    wq, bq, wk, bk, wv, bv, wt, bt, wf1, bf1, wf2, bf2 = params

    # Fused lane-dense projection slabs: [wq|wk|wv|wt] (32,128), [bq|bk|bv|bt] (1,128).
    w_slab = jnp.concatenate([wq, wk, wv, wt], axis=1)
    b_slab = jnp.concatenate([bq, bk, bv, bt], axis=1)

    # Key-padding mask -> per-batch valid lengths (int32 -> SMEM via scalar prefetch).
    # Assumes pad_attn_mask is a key-padding mask with a contiguous valid prefix.
    lens = (S - jnp.sum(pad_attn_mask[:, 0, :].astype(jnp.int32), axis=-1)).astype(jnp.int32)

    x2 = x.reshape(B * S, D)

    def full_spec(shape):
        return pl.BlockSpec(shape, lambda i, lens_ref: (0,) * len(shape))

    grid_spec = pltpu.PrefetchScalarGridSpec(
        num_scalar_prefetch=1,
        grid=(1,),                       # single-shot kernel: whole (B,S) in one block
        in_specs=[
            full_spec((B * S, D)),        # x (flattened)
            full_spec(w_slab.shape), full_spec(b_slab.shape),
            full_spec(wf1.shape), full_spec(bf1.shape),
            full_spec(wf2.shape), full_spec(bf2.shape),
        ],
        out_specs=full_spec((B * S, 2 * D)),
    )

    kernel = functools.partial(encoder_layer_kernel, batch=B, seq=S)
    packed = pl.pallas_call(
        kernel,
        grid_spec=grid_spec,
        out_shape=jax.ShapeDtypeStruct((B * S, 2 * D), jnp.float32),
        compiler_params=pltpu.CompilerParams(dimension_semantics=("arbitrary",)),
    )(lens, x2, w_slab, b_slab, wf1, bf1, wf2, bf2)

    out = packed[:, :D].reshape(B, S, D)
    ctx = packed[:, D:].reshape(B, S, N_HEADS * D_V)
    return out, ctx


def encoder_layer_ref(x, mask_bool, params):
    """Pure-JAX reference mirroring the PyTorch forward."""
    wq, bq, wk, bk, wv, bv, wt, bt, wf1, bf1, wf2, bf2 = params
    B, S, _ = x.shape
    q = (x @ wq + bq).reshape(B, S, N_HEADS, D_K).transpose(0, 2, 1, 3)
    k = (x @ wk + bk).reshape(B, S, N_HEADS, D_K).transpose(0, 2, 1, 3)
    v = (x @ wv + bv).reshape(B, S, N_HEADS, D_V).transpose(0, 2, 1, 3)
    scores = jnp.einsum("bhqd,bhkd->bhqk", q, k) / jnp.sqrt(jnp.float32(D_K))
    scores = jnp.where(mask_bool[:, None, :, :], jnp.float32(-1e9), scores)
    p = jax.nn.softmax(scores, axis=-1)
    ctx = jnp.einsum("bhqk,bhkd->bhqd", p, v).transpose(0, 2, 1, 3).reshape(B, S, N_HEADS * D_V)
    attn_out = ctx @ wt + bt
    y1 = _layernorm(attn_out + x)
    hdn = jax.nn.relu(y1 @ wf1 + bf1)
    out = _layernorm(x + (hdn @ wf2 + bf2))
    return out, ctx


def init_params(key):
    ks = jax.random.split(key, 12)

    def lin(kw, kb, fan_in, fan_out):
        w = jax.random.normal(kw, (fan_in, fan_out), jnp.float32) * 0.1
        b = jax.random.normal(kb, (1, fan_out), jnp.float32) * 0.1
        return w, b

    wq, bq = lin(ks[0], ks[1], D_MODEL, D_K * N_HEADS)
    wk, bk = lin(ks[2], ks[3], D_MODEL, D_K * N_HEADS)
    wv, bv = lin(ks[4], ks[5], D_MODEL, D_V * N_HEADS)
    wt, bt = lin(ks[6], ks[7], D_V * N_HEADS, D_MODEL)
    wf1, bf1 = lin(ks[8], ks[9], D_MODEL, D_FF)
    wf2, bf2 = lin(ks[10], ks[11], D_FF, D_MODEL)
    return (wq, bq, wk, bk, wv, bv, wt, bt, wf1, bf1, wf2, bf2)


if __name__ == "__main__":
    key = jax.random.PRNGKey(0)
    k_x, k_p = jax.random.split(key)

    B, S = 2, 8
    x = jax.random.normal(k_x, (B, S, D_MODEL), jnp.float32)

    # Key-padding mask: mask[b, i, j] = True when key position j is padding.
    lens = jnp.array([S, 5], dtype=jnp.int32)
    col = jnp.arange(S)[None, None, :]                        # (1, 1, S)
    mask_bool = jnp.broadcast_to(col >= lens[:, None, None], (B, S, S))

    params = init_params(k_p)

    out, self_attn = encoder_layer(x, mask_bool, params)
    jax.block_until_ready((out, self_attn))

    out_ref, self_attn_ref = encoder_layer_ref(x, mask_bool, params)

    assert out.shape == (B, S, D_MODEL) and self_attn.shape == (B, S, N_HEADS * D_V)
    assert jnp.allclose(out, out_ref, atol=1e-4, rtol=1e-4)
    assert jnp.allclose(self_attn, self_attn_ref, atol=1e-4, rtol=1e-4)

    print("KERNEL_OK")
</pallas_src>

<mosaic_0001>
module attributes {stable_mosaic.version = 11 : i64} {
  func.func @encoder_layer_kernel(%arg0: i32, %arg1: memref<2xi32, #tpu.memory_space<smem>>, %arg2: memref<16x32xf32, #tpu.memory_space<vmem>>, %arg3: memref<32x128xf32, #tpu.memory_space<vmem>>, %arg4: memref<1x128xf32, #tpu.memory_space<vmem>>, %arg5: memref<32x128xf32, #tpu.memory_space<vmem>>, %arg6: memref<1x128xf32, #tpu.memory_space<vmem>>, %arg7: memref<128x32xf32, #tpu.memory_space<vmem>>, %arg8: memref<1x32xf32, #tpu.memory_space<vmem>>, %arg9: memref<16x64xf32, #tpu.memory_space<vmem>>) attributes {dimension_semantics = [#tpu.dimension_semantics<arbitrary>], iteration_bounds = array<i64: 1>, scalar_prefetch = 1 : i64, scratch_operands = 0 : i64, tpu.core_type = #tpu.core_type<tc>, window_params = [{pipeline_mode = #tpu.pipeline_mode<synchronous>, transform_indices = @transform_0, window_bounds = array<i64: 16, 32>}, {pipeline_mode = #tpu.pipeline_mode<synchronous>, transform_indices = @transform_1, window_bounds = array<i64: 32, 128>}, {pipeline_mode = #tpu.pipeline_mode<synchronous>, transform_indices = @transform_2, window_bounds = array<i64: 1, 128>}, {pipeline_mode = #tpu.pipeline_mode<synchronous>, transform_indices = @transform_3, window_bounds = array<i64: 32, 128>}, {pipeline_mode = #tpu.pipeline_mode<synchronous>, transform_indices = @transform_4, window_bounds = array<i64: 1, 128>}, {pipeline_mode = #tpu.pipeline_mode<synchronous>, transform_indices = @transform_5, window_bounds = array<i64: 128, 32>}, {pipeline_mode = #tpu.pipeline_mode<synchronous>, transform_indices = @transform_6, window_bounds = array<i64: 1, 32>}, {pipeline_mode = #tpu.pipeline_mode<synchronous>, transform_indices = @transform_7, window_bounds = array<i64: 16, 64>}]} {
    %c0 = arith.constant 0 : index
    %c0_0 = arith.constant 0 : index
    %0 = vector.load %arg2[%c0, %c0_0] : memref<16x32xf32, #tpu.memory_space<vmem>>, vector<16x32xf32>
    %c0_1 = arith.constant 0 : index
    %c0_2 = arith.constant 0 : index
    %1 = vector.load %arg3[%c0_1, %c0_2] : memref<32x128xf32, #tpu.memory_space<vmem>>, vector<32x128xf32>
    %c0_3 = arith.constant 0 : index
    %c0_4 = arith.constant 0 : index
    %2 = vector.load %arg4[%c0_3, %c0_4] : memref<1x128xf32, #tpu.memory_space<vmem>>, vector<1x128xf32>
    %cst = arith.constant dense<0.000000e+00> : vector<16x128xf32>
    %3 = tpu.matmul %0, %1, %cst {dimension_numbers = #tpu.dot_dimension_numbers<[1], [0], [0], [1], [0, 0, 1, 1], [], []>} : vector<16x32xf32>, vector<32x128xf32>, vector<16x128xf32> -> vector<16x128xf32>
    %4 = vector.broadcast %2 : vector<1x128xf32> to vector<16x128xf32>
    %5 = arith.addf %3, %4 : vector<16x128xf32>
    %6 = vector.extract_strided_slice %5 {offsets = [0, 0], sizes = [16, 32], strides = [1, 1]} : vector<16x128xf32> to vector<16x32xf32>
    %cst_5 = arith.constant 8.000000e+00 : f32
    %7 = math.sqrt %cst_5 : f32
    %cst_6 = arith.constant 1.000000e+00 : f32
    %8 = arith.divf %cst_6, %7 : f32
    %9 = vector.broadcast %8 : f32 to vector<16x32xf32>
    %10 = arith.mulf %6, %9 : vector<16x32xf32>
    %11 = vector.extract_strided_slice %5 {offsets = [0, 32], sizes = [16, 32], strides = [1, 1]} : vector<16x128xf32> to vector<16x32xf32>
    %12 = vector.extract_strided_slice %5 {offsets = [0, 64], sizes = [16, 32], strides = [1, 1]} : vector<16x128xf32> to vector<16x32xf32>
    %13 = vector.extract_strided_slice %1 {offsets = [0, 96], sizes = [32, 32], strides = [1, 1]} : vector<32x128xf32> to vector<32x32xf32>
    %14 = vector.extract_strided_slice %2 {offsets = [0, 96], sizes = [1, 32], strides = [1, 1]} : vector<1x128xf32> to vector<1x32xf32>
    %15 = vector.shape_cast %10 : vector<16x32xf32> to vector<2x8x32xf32>
    %16 = vector.shape_cast %11 : vector<16x32xf32> to vector<2x8x32xf32>
    %17 = vector.shape_cast %12 : vector<16x32xf32> to vector<2x8x32xf32>
    %18 = tpu.iota {dimensions = array<i32: 1>} : vector<8x32xi32>
    %c0_i32 = arith.constant 0 : i32
    %19 = vector.broadcast %c0_i32 : i32 to vector<8x32xi32>
    %20 = arith.cmpi sge, %18, %19 : vector<8x32xi32>
    %c8_i32 = arith.constant 8 : i32
    %21 = vector.broadcast %c8_i32 : i32 to vector<8x32xi32>
    %22 = arith.cmpi slt, %18, %21 : vector<8x32xi32>
    %23 = arith.andi %20, %22 : vector<8x32xi1>
    %cst_7 = arith.constant 1.000000e+00 : f32
    %cst_8 = arith.constant 0.000000e+00 : f32
    %24 = vector.broadcast %cst_7 : f32 to vector<8x32xf32>
    %25 = vector.broadcast %cst_8 : f32 to vector<8x32xf32>
    %26 = arith.select %23, %24, %25 : vector<8x32xi1>, vector<8x32xf32>
    %c8_i32_9 = arith.constant 8 : i32
    %27 = vector.broadcast %c8_i32_9 : i32 to vector<8x32xi32>
    %28 = arith.cmpi sge, %18, %27 : vector<8x32xi32>
    %c16_i32 = arith.constant 16 : i32
    %29 = vector.broadcast %c16_i32 : i32 to vector<8x32xi32>
    %30 = arith.cmpi slt, %18, %29 : vector<8x32xi32>
    %31 = arith.andi %28, %30 : vector<8x32xi1>
    %cst_10 = arith.constant 1.000000e+00 : f32
    %cst_11 = arith.constant 0.000000e+00 : f32
    %32 = vector.broadcast %cst_10 : f32 to vector<8x32xf32>
    %33 = vector.broadcast %cst_11 : f32 to vector<8x32xf32>
    %34 = arith.select %31, %32, %33 : vector<8x32xi1>, vector<8x32xf32>
    %c16_i32_12 = arith.constant 16 : i32
    %35 = vector.broadcast %c16_i32_12 : i32 to vector<8x32xi32>
    %36 = arith.cmpi sge, %18, %35 : vector<8x32xi32>
    %c24_i32 = arith.constant 24 : i32
    %37 = vector.broadcast %c24_i32 : i32 to vector<8x32xi32>
    %38 = arith.cmpi slt, %18, %37 : vector<8x32xi32>
    %39 = arith.andi %36, %38 : vector<8x32xi1>
    %cst_13 = arith.constant 1.000000e+00 : f32
    %cst_14 = arith.constant 0.000000e+00 : f32
    %40 = vector.broadcast %cst_13 : f32 to vector<8x32xf32>
    %41 = vector.broadcast %cst_14 : f32 to vector<8x32xf32>
    %42 = arith.select %39, %40, %41 : vector<8x32xi1>, vector<8x32xf32>
    %c24_i32_15 = arith.constant 24 : i32
    %43 = vector.broadcast %c24_i32_15 : i32 to vector<8x32xi32>
    %44 = arith.cmpi sge, %18, %43 : vector<8x32xi32>
    %c32_i32 = arith.constant 32 : i32
    %45 = vector.broadcast %c32_i32 : i32 to vector<8x32xi32>
    %46 = arith.cmpi slt, %18, %45 : vector<8x32xi32>
    %47 = arith.andi %44, %46 : vector<8x32xi1>
    %cst_16 = arith.constant 1.000000e+00 : f32
    %cst_17 = arith.constant 0.000000e+00 : f32
    %48 = vector.broadcast %cst_16 : f32 to vector<8x32xf32>
    %49 = vector.broadcast %cst_17 : f32 to vector<8x32xf32>
    %50 = arith.select %47, %48, %49 : vector<8x32xi1>, vector<8x32xf32>
    %51 = tpu.concatenate %26, %34, %42, %50 in 0 : vector<8x32xf32>, vector<8x32xf32>, vector<8x32xf32>, vector<8x32xf32> -> vector<32x32xf32>
    %52 = tpu.concatenate %16, %16, %16, %16 in 1 : vector<2x8x32xf32>, vector<2x8x32xf32>, vector<2x8x32xf32>, vector<2x8x32xf32> -> vector<2x32x32xf32>
    %53 = vector.shape_cast %51 : vector<32x32xf32> to vector<1x32x32xf32>
    %54 = vector.broadcast %53 : vector<1x32x32xf32> to vector<2x32x32xf32>
    %55 = arith.mulf %52, %54 : vector<2x32x32xf32>
    %56 = tpu.concatenate %17, %17, %17, %17 in 1 : vector<2x8x32xf32>, vector<2x8x32xf32>, vector<2x8x32xf32>, vector<2x8x32xf32> -> vector<2x32x32xf32>
    %57 = vector.shape_cast %51 : vector<32x32xf32> to vector<1x32x32xf32>
    %58 = vector.broadcast %57 : vector<1x32x32xf32> to vector<2x32x32xf32>
    %59 = arith.mulf %56, %58 : vector<2x32x32xf32>
    "tpu.trace_start"() <{level = 10 : i32, message = "bqd,bkd->bqk"}> : () -> ()
    %cst_18 = arith.constant dense<0.000000e+00> : vector<2x8x32xf32>
    %60 = tpu.matmul %15, %55, %cst_18 {dimension_numbers = #tpu.dot_dimension_numbers<[2], [2], [1], [1], [0, 0, 0, 1, 1, 1], [0], [0]>} : vector<2x8x32xf32>, vector<2x32x32xf32>, vector<2x8x32xf32> -> vector<2x8x32xf32>
    "tpu.trace_stop"() : () -> ()
    %61 = tpu.iota {dimensions = array<i32: 2>} : vector<1x1x8xi32>
    %c0_19 = arith.constant 0 : index
    %62 = memref.load %arg1[%c0_19] : memref<2xi32, #tpu.memory_space<smem>>
    %63 = vector.broadcast %62 : i32 to vector<1x1x8xi32>
    %64 = arith.cmpi slt, %61, %63 : vector<1x1x8xi32>
    %cst_20 = arith.constant 0.000000e+00 : f32
    %cst_21 = arith.constant -1.000000e+09 : f32
    %65 = vector.broadcast %cst_20 : f32 to vector<1x1x8xf32>
    %66 = vector.broadcast %cst_21 : f32 to vector<1x1x8xf32>
    %67 = arith.select %64, %65, %66 : vector<1x1x8xi1>, vector<1x1x8xf32>
    %c1 = arith.constant 1 : index
    %68 = memref.load %arg1[%c1] : memref<2xi32, #tpu.memory_space<smem>>
    %69 = vector.broadcast %68 : i32 to vector<1x1x8xi32>
    %70 = arith.cmpi slt, %61, %69 : vector<1x1x8xi32>
    %cst_22 = arith.constant 0.000000e+00 : f32
    %cst_23 = arith.constant -1.000000e+09 : f32
    %71 = vector.broadcast %cst_22 : f32 to vector<1x1x8xf32>
    %72 = vector.broadcast %cst_23 : f32 to vector<1x1x8xf32>
    %73 = arith.select %70, %71, %72 : vector<1x1x8xi1>, vector<1x1x8xf32>
    %74 = tpu.concatenate %67, %73 in 0 : vector<1x1x8xf32>, vector<1x1x8xf32> -> vector<2x1x8xf32>
    %75 = tpu.concatenate %74, %74, %74, %74 in 2 : vector<2x1x8xf32>, vector<2x1x8xf32>, vector<2x1x8xf32>, vector<2x1x8xf32> -> vector<2x1x32xf32>
    %76 = vector.broadcast %75 : vector<2x1x32xf32> to vector<2x8x32xf32>
    %77 = arith.addf %60, %76 : vector<2x8x32xf32>
    %cst_24 = arith.constant dense<0xFF800000> : vector<2x8xf32>
    %78 = vector.multi_reduction <maximumf>, %77, %cst_24 [2] : vector<2x8x32xf32> to vector<2x8xf32>
    %79 = vector.shape_cast %78 : vector<2x8xf32> to vector<2x8x1xf32>
    %80 = vector.broadcast %79 : vector<2x8x1xf32> to vector<2x8x32xf32>
    %81 = arith.subf %77, %80 : vector<2x8x32xf32>
    %82 = math.exp %81 : vector<2x8x32xf32>
    "tpu.trace_start"() <{level = 10 : i32, message = "bqk,bkd->bqd"}> : () -> ()
    %cst_25 = arith.constant dense<0.000000e+00> : vector<2x8x32xf32>
    %83 = tpu.matmul %82, %59, %cst_25 {dimension_numbers = #tpu.dot_dimension_numbers<[2], [1], [1], [2], [0, 0, 0, 1, 1, 2], [0], [0]>} : vector<2x8x32xf32>, vector<2x32x32xf32>, vector<2x8x32xf32> -> vector<2x8x32xf32>
    "tpu.trace_stop"() : () -> ()
    %84 = vector.shape_cast %82 : vector<2x8x32xf32> to vector<16x32xf32>
    %cst_26 = arith.constant dense<0.000000e+00> : vector<16x32xf32>
    %85 = tpu.matmul %84, %51, %cst_26 {dimension_numbers = #tpu.dot_dimension_numbers<[1], [0], [0], [1], [0, 0, 1, 1], [], []>} : vector<16x32xf32>, vector<32x32xf32>, vector<16x32xf32> -> vector<16x32xf32>
    %86 = vector.shape_cast %83 : vector<2x8x32xf32> to vector<16x32xf32>
    %87 = tpu.reciprocal %85 : vector<16x32xf32> -> vector<16x32xf32>
    %88 = arith.mulf %86, %87 : vector<16x32xf32>
    %cst_27 = arith.constant dense<0.000000e+00> : vector<16x32xf32>
    %89 = tpu.matmul %88, %13, %cst_27 {dimension_numbers = #tpu.dot_dimension_numbers<[1], [0], [0], [1], [0, 0, 1, 1], [], []>} : vector<16x32xf32>, vector<32x32xf32>, vector<16x32xf32> -> vector<16x32xf32>
    %90 = vector.broadcast %14 : vector<1x32xf32> to vector<16x32xf32>
    %91 = arith.addf %89, %90 : vector<16x32xf32>
    %92 = arith.addf %91, %0 : vector<16x32xf32>
    %cst_28 = arith.constant dense<0.000000e+00> : vector<16xf32>
    %93 = vector.multi_reduction <add>, %92, %cst_28 [1] : vector<16x32xf32> to vector<16xf32>
    %94 = vector.shape_cast %93 : vector<16xf32> to vector<16x1xf32>
    %cst_29 = arith.constant 3.200000e+01 : f32
    %95 = vector.broadcast %cst_29 : f32 to vector<16x1xf32>
    %96 = arith.divf %94, %95 : vector<16x1xf32>
    %97 = vector.broadcast %96 : vector<16x1xf32> to vector<16x32xf32>
    %98 = arith.subf %92, %97 : vector<16x32xf32>
    %99 = arith.mulf %98, %98 : vector<16x32xf32>
    %cst_30 = arith.constant dense<0.000000e+00> : vector<16xf32>
    %100 = vector.multi_reduction <add>, %99, %cst_30 [1] : vector<16x32xf32> to vector<16xf32>
    %101 = vector.shape_cast %100 : vector<16xf32> to vector<16x1xf32>
    %cst_31 = arith.constant 3.200000e+01 : f32
    %102 = vector.broadcast %cst_31 : f32 to vector<16x1xf32>
    %103 = arith.divf %101, %102 : vector<16x1xf32>
    %104 = vector.broadcast %96 : vector<16x1xf32> to vector<16x32xf32>
    %105 = arith.subf %92, %104 : vector<16x32xf32>
    %cst_32 = arith.constant 9.99999974E-6 : f32
    %106 = vector.broadcast %cst_32 : f32 to vector<16x1xf32>
    %107 = arith.addf %103, %106 : vector<16x1xf32>
    %108 = math.rsqrt %107 : vector<16x1xf32>
    %109 = vector.broadcast %108 : vector<16x1xf32> to vector<16x32xf32>
    %110 = arith.mulf %105, %109 : vector<16x32xf32>
    %c0_33 = arith.constant 0 : index
    %c0_34 = arith.constant 0 : index
    %111 = vector.load %arg5[%c0_33, %c0_34] : memref<32x128xf32, #tpu.memory_space<vmem>>, vector<32x128xf32>
    %cst_35 = arith.constant dense<0.000000e+00> : vector<16x128xf32>
    %112 = tpu.matmul %110, %111, %cst_35 {dimension_numbers = #tpu.dot_dimension_numbers<[1], [0], [0], [1], [0, 0, 1, 1], [], []>} : vector<16x32xf32>, vector<32x128xf32>, vector<16x128xf32> -> vector<16x128xf32>
    %c0_36 = arith.constant 0 : index
    %c0_37 = arith.constant 0 : index
    %113 = vector.load %arg6[%c0_36, %c0_37] : memref<1x128xf32, #tpu.memory_space<vmem>>, vector<1x128xf32>
    %114 = vector.broadcast %113 : vector<1x128xf32> to vector<16x128xf32>
    %115 = arith.addf %112, %114 : vector<16x128xf32>
    %cst_38 = arith.constant 0.000000e+00 : f32
    %116 = vector.broadcast %cst_38 : f32 to vector<16x128xf32>
    %117 = arith.maximumf %115, %116 : vector<16x128xf32>
    %c0_39 = arith.constant 0 : index
    %c0_40 = arith.constant 0 : index
    %118 = vector.load %arg7[%c0_39, %c0_40] : memref<128x32xf32, #tpu.memory_space<vmem>>, vector<128x32xf32>
    %cst_41 = arith.constant dense<0.000000e+00> : vector<16x32xf32>
    %119 = tpu.matmul %117, %118, %cst_41 {dimension_numbers = #tpu.dot_dimension_numbers<[1], [0], [0], [1], [0, 0, 1, 1], [], []>} : vector<16x128xf32>, vector<128x32xf32>, vector<16x32xf32> -> vector<16x32xf32>
    %c0_42 = arith.constant 0 : index
    %c0_43 = arith.constant 0 : index
    %120 = vector.load %arg8[%c0_42, %c0_43] : memref<1x32xf32, #tpu.memory_space<vmem>>, vector<1x32xf32>
    %121 = vector.broadcast %120 : vector<1x32xf32> to vector<16x32xf32>
    %122 = arith.addf %119, %121 : vector<16x32xf32>
    %123 = arith.addf %0, %122 : vector<16x32xf32>
    %cst_44 = arith.constant dense<0.000000e+00> : vector<16xf32>
    %124 = vector.multi_reduction <add>, %123, %cst_44 [1] : vector<16x32xf32> to vector<16xf32>
    %125 = vector.shape_cast %124 : vector<16xf32> to vector<16x1xf32>
    %cst_45 = arith.constant 3.200000e+01 : f32
    %126 = vector.broadcast %cst_45 : f32 to vector<16x1xf32>
    %127 = arith.divf %125, %126 : vector<16x1xf32>
    %128 = vector.broadcast %127 : vector<16x1xf32> to vector<16x32xf32>
    %129 = arith.subf %123, %128 : vector<16x32xf32>
    %130 = arith.mulf %129, %129 : vector<16x32xf32>
    %cst_46 = arith.constant dense<0.000000e+00> : vector<16xf32>
    %131 = vector.multi_reduction <add>, %130, %cst_46 [1] : vector<16x32xf32> to vector<16xf32>
    %132 = vector.shape_cast %131 : vector<16xf32> to vector<16x1xf32>
    %cst_47 = arith.constant 3.200000e+01 : f32
    %133 = vector.broadcast %cst_47 : f32 to vector<16x1xf32>
    %134 = arith.divf %132, %133 : vector<16x1xf32>
    %135 = vector.broadcast %127 : vector<16x1xf32> to vector<16x32xf32>
    %136 = arith.subf %123, %135 : vector<16x32xf32>
    %cst_48 = arith.constant 9.99999974E-6 : f32
    %137 = vector.broadcast %cst_48 : f32 to vector<16x1xf32>
    %138 = arith.addf %134, %137 : vector<16x1xf32>
    %139 = math.rsqrt %138 : vector<16x1xf32>
    %140 = vector.broadcast %139 : vector<16x1xf32> to vector<16x32xf32>
    %141 = arith.mulf %136, %140 : vector<16x32xf32>
    %142 = tpu.concatenate %141, %88 in 1 : vector<16x32xf32>, vector<16x32xf32> -> vector<16x64xf32>
    %c0_49 = arith.constant 0 : index
    %c0_50 = arith.constant 0 : index
    %143 = vector.load %arg9[%c0_49, %c0_50] : memref<16x64xf32, #tpu.memory_space<vmem>>, vector<16x64xf32>
    tpu.vector_store %arg9[%c0_49, %c0_50], %142 {strides = array<i32>} : memref<16x64xf32, #tpu.memory_space<vmem>>, vector<16x64xf32>,
    return
  }
  func.func @transform_0(%arg0: i32, %arg1: memref<2xi32, #tpu.memory_space<smem>>) -> (i32, i32) {
    %c0_i32 = arith.constant 0 : i32
    %c0_i32_0 = arith.constant 0 : i32
    %c0_i32_1 = arith.constant 0 : i32
    return %c0_i32, %c0_i32_0 : i32, i32
  }
  func.func @transform_1(%arg0: i32, %arg1: memref<2xi32, #tpu.memory_space<smem>>) -> (i32, i32) {
    %c0_i32 = arith.constant 0 : i32
    %c0_i32_0 = arith.constant 0 : i32
    %c0_i32_1 = arith.constant 0 : i32
    return %c0_i32, %c0_i32_0 : i32, i32
  }
  func.func @transform_2(%arg0: i32, %arg1: memref<2xi32, #tpu.memory_space<smem>>) -> (i32, i32) {
    %c0_i32 = arith.constant 0 : i32
    %c0_i32_0 = arith.constant 0 : i32
    %c0_i32_1 = arith.constant 0 : i32
    return %c0_i32, %c0_i32_0 : i32, i32
  }
  func.func @transform_3(%arg0: i32, %arg1: memref<2xi32, #tpu.memory_space<smem>>) -> (i32, i32) {
    %c0_i32 = arith.constant 0 : i32
    %c0_i32_0 = arith.constant 0 : i32
    %c0_i32_1 = arith.constant 0 : i32
    return %c0_i32, %c0_i32_0 : i32, i32
  }
  func.func @transform_4(%arg0: i32, %arg1: memref<2xi32, #tpu.memory_space<smem>>) -> (i32, i32) {
    %c0_i32 = arith.constant 0 : i32
    %c0_i32_0 = arith.constant 0 : i32
    %c0_i32_1 = arith.constant 0 : i32
    return %c0_i32, %c0_i32_0 : i32, i32
  }
  func.func @transform_5(%arg0: i32, %arg1: memref<2xi32, #tpu.memory_space<smem>>) -> (i32, i32) {
    %c0_i32 = arith.constant 0 : i32
    %c0_i32_0 = arith.constant 0 : i32
    %c0_i32_1 = arith.constant 0 : i32
    return %c0_i32, %c0_i32_0 : i32, i32
  }
  func.func @transform_6(%arg0: i32, %arg1: memref<2xi32, #tpu.memory_space<smem>>) -> (i32, i32) {
    %c0_i32 = arith.constant 0 : i32
    %c0_i32_0 = arith.constant 0 : i32
    %c0_i32_1 = arith.constant 0 : i32
    return %c0_i32, %c0_i32_0 : i32, i32
  }
  func.func @transform_7(%arg0: i32, %arg1: memref<2xi32, #tpu.memory_space<smem>>) -> (i32, i32) {
    %c0_i32 = arith.constant 0 : i32
    %c0_i32_0 = arith.constant 0 : i32
    %c0_i32_1 = arith.constant 0 : i32
    return %c0_i32, %c0_i32_0 : i32, i32
  }
}

</mosaic_0001>

<llo_original>
// kernel: tpu_custom_call.1
$region0: #{tpu_custom_call.1}
  #allocation0 [shape = 'u32[]', space=smem, size = 0x4, offset = 0x4, fixed_abs, tag = 'smem constant byte address 0x4 - core index']
  #allocation1 [shape = 'u32[72,128]{1,0:T(1,128)}', space=vmem, size = 0x9000, scoped, tag = 'internal scratch']
  #allocation2 [shape = 's32[1]{0}', space=sflag, size = 0x4, scoped, tag = 'scoped memory for tpu_custom_call.1']
  #allocation3 [shape = 'u8[512]{0}', space=smem, size = 0x200, scoped, tag = 'prefetched SMEM operand 0']
  %s0 = inlined_call_operand.vmem [shape: s32[2], index: 0, kind: input, shape index: {}]
  %s1 = inlined_call_operand.vmem [shape: f32[16,32], index: 1, kind: input, shape index: {}]
  %s2 = inlined_call_operand.vmem [shape: f32[32,128], index: 2, kind: input, shape index: {}]
  %s3 = inlined_call_operand.vmem [shape: f32[1,128], index: 3, kind: input, shape index: {}]
  %s4 = inlined_call_operand.vmem [shape: f32[32,128], index: 4, kind: input, shape index: {}]
  %s5 = inlined_call_operand.vmem [shape: f32[1,128], index: 5, kind: input, shape index: {}]
  %s6 = inlined_call_operand.vmem [shape: f32[128,32], index: 6, kind: input, shape index: {}]
  %s7 = inlined_call_operand.vmem [shape: f32[1,32], index: 7, kind: input, shape index: {}]
  %s8 = inlined_call_operand.hbm [shape: f32[16,64], index: 8, kind: output, shape index: {}]
  %s9 = sld [smem:[#allocation0]]
  $region38: #{tpu_custom_call.1} parent=0
    _
  %s11 = ssub.s32 1, %s9
  %s12 = scalar_select 0, %s11, %s9
  %s14 = sshll.u32 %s0, 4
  %s15 = int_to_ptr.vmem [resolvable:$true] %s14
  %17 = dma.vmem_to_smem %s15, 16, [#allocation3], [#allocation2]
  %19 = dma.done [#allocation2], 16
  %20 = sfence
  $region1: #{tpu_custom_call.1} parent=0
    #allocation4 [shape = 'u8[8192]{0}', space=vmem, size = 0x2000, scoped, tag = 'output window, operand 0, single buffered']
    #allocation5 [shape = 's32[1]{0}', space=sflag, size = 0x4, scoped, tag = 'scoped memory for tpu_custom_call.1']
    %21 = vsyncpa [#allocation5], 0
    // Predicated region
    $region2: #{tpu_custom_call.1} parent=1 // pred_check
      _
    $region3: #{tpu_custom_call.1} parent=1 // pred_check_branch
      %23 = sbr.rel (0) target = $region5
    $region4: #{tpu_custom_call.1} parent=1 // pred_region
      _
    $region5: #{tpu_custom_call.1} parent=1 // pred_fallthru
      _
    // Predicated region
    $region6: #{tpu_custom_call.1} parent=1 // pred_check
      _
    $region7: #{tpu_custom_call.1} parent=1 // pred_check_branch
      %25 = sbr.rel (0) target = $region9
    $region8: #{tpu_custom_call.1} parent=1 // pred_region
      _
    $region9: #{tpu_custom_call.1} parent=1 // pred_fallthru
      _
    // Predicated region
    $region10: #{tpu_custom_call.1} parent=1 // pred_check
      _
    $region11: #{tpu_custom_call.1} parent=1 // pred_check_branch
      %27 = sbr.rel (0) target = $region13
    $region12: #{tpu_custom_call.1} parent=1 // pred_region
      _
    $region13: #{tpu_custom_call.1} parent=1 // pred_fallthru
      _
    // Predicated region
    $region14: #{tpu_custom_call.1} parent=1 // pred_check
      _
    $region15: #{tpu_custom_call.1} parent=1 // pred_check_branch
      %29 = sbr.rel (0) target = $region17
    $region16: #{tpu_custom_call.1} parent=1 // pred_region
      _
    $region17: #{tpu_custom_call.1} parent=1 // pred_fallthru
      _
    // Predicated region
    $region18: #{tpu_custom_call.1} parent=1 // pred_check
      _
    $region19: #{tpu_custom_call.1} parent=1 // pred_check_branch
      %31 = sbr.rel (0) target = $region21
    $region20: #{tpu_custom_call.1} parent=1 // pred_region
      _
    $region21: #{tpu_custom_call.1} parent=1 // pred_fallthru
      _
    // Predicated region
    $region22: #{tpu_custom_call.1} parent=1 // pred_check
      _
    $region23: #{tpu_custom_call.1} parent=1 // pred_check_branch
      %33 = sbr.rel (0) target = $region25
    $region24: #{tpu_custom_call.1} parent=1 // pred_region
      _
    $region25: #{tpu_custom_call.1} parent=1 // pred_fallthru
      _
    // Predicated region
    $region26: #{tpu_custom_call.1} parent=1 // pred_check
      _
    $region27: #{tpu_custom_call.1} parent=1 // pred_check_branch
      %35 = sbr.rel (0) target = $region29
    $region28: #{tpu_custom_call.1} parent=1 // pred_region
      _
    $region29: #{tpu_custom_call.1} parent=1 // pred_fallthru
      _
    %v36 = vld [vmem:[%s1] sm:$0xff]
    %v37 = vld [vmem:[%s1 + $0x8] sm:$0xff]
    %v38 = vld [vmem:[%s2] sm:$0xff]
    %v39 = vld [vmem:[%s2 + $0x8] sm:$0xff]
    %v40 = vld [vmem:[%s2 + $0x10] sm:$0xff]
    %v41 = vld [vmem:[%s2 + $0x18] sm:$0xff]
    %v42 = vld [vmem:[%s3] sm:$0x1]
    %v44 = vperm.slane %v42, 0
    %vm46 = vcmask 261120
    %v48 = vsel %vm46, %v36, 0
    %v51 = vsel %vm46, %v37, 0
    %53 = vmatpush.msra.mxu0 0.0
    %54 = vmatpush.msra.mxu0 0.0
    %55 = vmatpush.msra.mxu0 0.0
    %56 = vmatpush.msra.mxu0 0.0
    %57 = vmatpush.msra.mxu0 0.0
    %58 = vmatpush.msra.mxu0 0.0
    %59 = vmatpush.msra.mxu0 0.0
    %60 = vmatpush.msra.mxu0 0.0
    %61 = vmatpush.msra.mxu0 0.0
    %62 = vmatpush.msra.mxu0 0.0
    %63 = vmatpush.msra.mxu0 0.0
    %64 = vmatpush.msra.mxu0 0.0
    %65 = vmatpush.msra.mxu0 %v41
    %66 = vmatpush.msra.mxu0 %v40
    %67 = vmatpush.msra.mxu0 %v39
    %68 = vmatpush.msra.mxu0 %v38
    %69 = vmatmul.f32.gmra.mxu0 %v48
    %v70 = vpop.f32.mrf.mxu0
    %v71 = vadd.f32 %v44, %v70
    %72 = vmatmul.f32.gmra.mxu0 %v51
    %v73 = vpop.f32.mrf.mxu0
    %v74 = vadd.f32 %v44, %v73
    %75 = vdwg.mxu0
    %v76 = vmul.f32 %v71, 0.35355338
    %v77 = vmul.f32 %v74, 0.35355338
    %v78 = vlaneseq
    %v79 = vand.u32 %v78, 127
    %vm80 = vcmp.ge.s32.totalorder %v79, 0
    %vm81 = vcmp.lt.s32.totalorder %v79, 8
    %vm82 = vmand %vm80, %vm81
    %v83 = vsel %vm82, 1.0, 0.0
    %vm84 = vcmp.ge.s32.totalorder %v79, 8
    %vm85 = vcmp.lt.s32.totalorder %v79, 16
    %vm86 = vmand %vm84, %vm85
    %v87 = vsel %vm86, 1.0, 0.0
    %vm88 = vcmp.ge.s32.totalorder %v79, 16
    %vm89 = vcmp.lt.s32.totalorder %v79, 24
    %vm90 = vmand %vm88, %vm89
    %v91 = vsel %vm90, 1.0, 0.0
    %vm92 = vcmp.ge.s32.totalorder %v79, 24
    %vm93 = vcmp.lt.s32.totalorder %v79, 32
    %vm94 = vmand %vm92, %vm93
    %v95 = vsel %vm94, 1.0, 0.0
    %100 = vrot.lane.b32.xlu0 %v83, 32
    %v101 = vpop.permute.xlu0 %100
    %102 = vrot.lane.b32.xlu0 %v87, 32
    %v103 = vpop.permute.xlu0 %102
    %104 = vrot.lane.b32.xlu0 %v91, 32
    %v105 = vpop.permute.xlu0 %104
    %106 = vrot.lane.b32.xlu0 %v95, 32
    %v107 = vpop.permute.xlu0 %106
    %v112 = vmul.f32 %v71, %v101
    %v113 = vmul.f32 %v71, %v103
    %v114 = vmul.f32 %v71, %v105
    %v115 = vmul.f32 %v71, %v107
    %v116 = vmul.f32 %v74, %v101
    %v117 = vmul.f32 %v74, %v103
    %v118 = vmul.f32 %v74, %v105
    %v119 = vmul.f32 %v74, %v107
    %120 = vrot.lane.b32.xlu0 %v83, 64
    %v121 = vpop.permute.xlu0 %120
    %122 = vrot.lane.b32.xlu0 %v87, 64
    %v123 = vpop.permute.xlu0 %122
    %124 = vrot.lane.b32.xlu0 %v91, 64
    %v125 = vpop.permute.xlu0 %124
    %126 = vrot.lane.b32.xlu0 %v95, 64
    %v127 = vpop.permute.xlu0 %126
    %v132 = vmul.f32 %v71, %v121
    %v133 = vmul.f32 %v71, %v123
    %v134 = vmul.f32 %v71, %v125
    %v135 = vmul.f32 %v71, %v127
    %v136 = vmul.f32 %v74, %v121
    %v137 = vmul.f32 %v74, %v123
    %v138 = vmul.f32 %v74, %v125
    %v139 = vmul.f32 %v74, %v127
    %s140 = sld [smem:[#allocation3]]
    %v141 = vstv %s140
    %vm142 = vcmp.lt.s32.totalorder %v79, %v141
    %v143 = vsel %vm142, 0.0, -1e+09
    %s144 = sld [smem:[#allocation3 + $0x1]]
    %v145 = vstv %s144
    %vm146 = vcmp.lt.s32.totalorder %v79, %v145
    %v147 = vsel %vm146, 0.0, -1e+09
    %150 = vrot.lane.b32.xlu0 %v143, 8
    %v151 = vpop.permute.xlu0 %150
    %152 = vrot.lane.b32.xlu0 %v147, 8
    %v153 = vpop.permute.xlu0 %152
    %156 = vrot.lane.b32.xlu0 %v143, 16
    %v157 = vpop.permute.xlu0 %156
    %158 = vrot.lane.b32.xlu0 %v147, 16
    %v159 = vpop.permute.xlu0 %158
    %162 = vrot.lane.b32.xlu0 %v143, 24
    %v163 = vpop.permute.xlu0 %162
    %164 = vrot.lane.b32.xlu0 %v147, 24
    %v165 = vpop.permute.xlu0 %164
    %vm168 = vcmask 64512
    %v169 = vsel %vm168, %v143, %v151
    %v170 = vsel %vm168, %v147, %v153
    %vm171 = vcmask 130048
    %v172 = vsel %vm171, %v169, %v157
    %v173 = vsel %vm171, %v170, %v159
    %vm174 = vcmask 195584
    %v175 = vsel %vm174, %v172, %v163
    %v176 = vsel %vm174, %v173, %v165
    %v177 = vperm.slane %v175, 0
    %v178 = vperm.slane %v176, 0
    %183 = vrot.lane.b32.xlu0 %v112, 96
    %v184 = vpop.permute.xlu0 %183
    %185 = vrot.lane.b32.xlu0 %v113, 96
    %v186 = vpop.permute.xlu0 %185
    %187 = vrot.lane.b32.xlu0 %v114, 96
    %v188 = vpop.permute.xlu0 %187
    %189 = vrot.lane.b32.xlu0 %v115, 96
    %v190 = vpop.permute.xlu0 %189
    %v192 = vsel %vm46, %v76, 0
    %v194 = vsel %vm46, %v184, 0
    %v196 = vsel %vm46, %v186, 0
    %v198 = vsel %vm46, %v188, 0
    %v200 = vsel %vm46, %v190, 0
    %202 = vmatpush.xpose.msra.mxu0 0.0
    %203 = vmatpush.xpose.msra.mxu0 0.0
    %204 = vmatpush.xpose.msra.mxu0 0.0
    %205 = vmatpush.xpose.msra.mxu0 0.0
    %206 = vmatpush.xpose.msra.mxu0 0.0
    %207 = vmatpush.xpose.msra.mxu0 0.0
    %208 = vmatpush.xpose.msra.mxu0 0.0
    %209 = vmatpush.xpose.msra.mxu0 0.0
    %210 = vmatpush.xpose.msra.mxu0 0.0
    %211 = vmatpush.xpose.msra.mxu0 0.0
    %212 = vmatpush.xpose.msra.mxu0 0.0
    %213 = vmatpush.xpose.msra.mxu0 0.0
    %214 = vmatpush.xpose.msra.mxu0 %v200
    %215 = vmatpush.xpose.msra.mxu0 %v198
    %216 = vmatpush.xpose.msra.mxu0 %v196
    %217 = vmatpush.xpose.msra.mxu0 %v194
    %218 = vmatmul.f32.gmra.mxu0 %v192
    %v219 = vpop.f32.mrf.mxu0
    %v220 = vadd.f32 %v177, %v219
    %221 = vdwg.mxu0
    %226 = vrot.lane.b32.xlu0 %v116, 96
    %v227 = vpop.permute.xlu0 %226
    %228 = vrot.lane.b32.xlu0 %v117, 96
    %v229 = vpop.permute.xlu0 %228
    %230 = vrot.lane.b32.xlu0 %v118, 96
    %v231 = vpop.permute.xlu0 %230
    %232 = vrot.lane.b32.xlu0 %v119, 96
    %v233 = vpop.permute.xlu0 %232
    %v235 = vsel %vm46, %v77, 0
    %v237 = vsel %vm46, %v227, 0
    %v239 = vsel %vm46, %v229, 0
    %v241 = vsel %vm46, %v231, 0
    %v243 = vsel %vm46, %v233, 0
    %245 = vmatpush.xpose.msra.mxu0 0.0
    %246 = vmatpush.xpose.msra.mxu0 0.0
    %247 = vmatpush.xpose.msra.mxu0 0.0
    %248 = vmatpush.xpose.msra.mxu0 0.0
    %249 = vmatpush.xpose.msra.mxu0 0.0
    %250 = vmatpush.xpose.msra.mxu0 0.0
    %251 = vmatpush.xpose.msra.mxu0 0.0
    %252 = vmatpush.xpose.msra.mxu0 0.0
    %253 = vmatpush.xpose.msra.mxu0 0.0
    %254 = vmatpush.xpose.msra.mxu0 0.0
    %255 = vmatpush.xpose.msra.mxu0 0.0
    %256 = vmatpush.xpose.msra.mxu0 0.0
    %257 = vmatpush.xpose.msra.mxu0 %v243
    %258 = vmatpush.xpose.msra.mxu0 %v241
    %259 = vmatpush.xpose.msra.mxu0 %v239
    %260 = vmatpush.xpose.msra.mxu0 %v237
    %261 = vmatmul.f32.gmra.mxu0 %v235
    %v262 = vpop.f32.mrf.mxu0
    %v263 = vadd.f32 %v178, %v262
    %264 = vdwg.mxu0
    %v265 = vsel %vm46, %v220, -inf
    %266 = vmax.xlane.f32.xlu0 %v265
    %v267 = vpop.xlane.xlu0 %266
    %v268 = vsel %vm46, %v263, -inf
    %269 = vmax.xlane.f32.xlu0 %v268
    %v270 = vpop.xlane.xlu0 %269
    %v271 = vsub.f32 %v220, %v267
    %v272 = vsub.f32 %v263, %v270
    %v273 = vmul.f32 %v271, 1.442695
    %v274 = vpow.pop %v273
    %v275 = vmul.f32 %v272, 1.442695
    %v276 = vpow.pop %v275
    %281 = vrot.lane.b32.xlu0 %v132, 64
    %v282 = vpop.permute.xlu0 %281
    %283 = vrot.lane.b32.xlu0 %v133, 64
    %v284 = vpop.permute.xlu0 %283
    %285 = vrot.lane.b32.xlu0 %v134, 64
    %v286 = vpop.permute.xlu0 %285
    %287 = vrot.lane.b32.xlu0 %v135, 64
    %v288 = vpop.permute.xlu0 %287
    %v294 = vsel %vm46, %v274, 0
    %296 = vmatpush.msra.mxu0 0.0
    %297 = vmatpush.msra.mxu0 0.0
    %298 = vmatpush.msra.mxu0 0.0
    %299 = vmatpush.msra.mxu0 0.0
    %300 = vmatpush.msra.mxu0 0.0
    %301 = vmatpush.msra.mxu0 0.0
    %302 = vmatpush.msra.mxu0 0.0
    %303 = vmatpush.msra.mxu0 0.0
    %304 = vmatpush.msra.mxu0 0.0
    %305 = vmatpush.msra.mxu0 0.0
    %306 = vmatpush.msra.mxu0 0.0
    %307 = vmatpush.msra.mxu0 0.0
    %308 = vmatpush.msra.mxu0 %v288
    %309 = vmatpush.msra.mxu0 %v286
    %310 = vmatpush.msra.mxu0 %v284
    %311 = vmatpush.msra.mxu0 %v282
    %312 = vmatmul.f32.gmra.mxu0 %v294
    %v313 = vpop.f32.mrf.mxu0
    %v314 = vadd.f32 0.0, %v313
    %315 = vdwg.mxu0
    %320 = vrot.lane.b32.xlu0 %v136, 64
    %v321 = vpop.permute.xlu0 %320
    %322 = vrot.lane.b32.xlu0 %v137, 64
    %v323 = vpop.permute.xlu0 %322
    %324 = vrot.lane.b32.xlu0 %v138, 64
    %v325 = vpop.permute.xlu0 %324
    %326 = vrot.lane.b32.xlu0 %v139, 64
    %v327 = vpop.permute.xlu0 %326
    %v333 = vsel %vm46, %v276, 0
    %335 = vmatpush.msra.mxu0 0.0
    %336 = vmatpush.msra.mxu0 0.0
    %337 = vmatpush.msra.mxu0 0.0
    %338 = vmatpush.msra.mxu0 0.0
    %339 = vmatpush.msra.mxu0 0.0
    %340 = vmatpush.msra.mxu0 0.0
    %341 = vmatpush.msra.mxu0 0.0
    %342 = vmatpush.msra.mxu0 0.0
    %343 = vmatpush.msra.mxu0 0.0
    %344 = vmatpush.msra.mxu0 0.0
    %345 = vmatpush.msra.mxu0 0.0
    %346 = vmatpush.msra.mxu0 0.0
    %347 = vmatpush.msra.mxu0 %v327
    %348 = vmatpush.msra.mxu0 %v325
    %349 = vmatpush.msra.mxu0 %v323
    %350 = vmatpush.msra.mxu0 %v321
    %351 = vmatmul.f32.gmra.mxu0 %v333
    %v352 = vpop.f32.mrf.mxu0
    %v353 = vadd.f32 0.0, %v352
    %354 = vdwg.mxu0
    %355 = vmatpush.msra.mxu0 0.0
    %356 = vmatpush.msra.mxu0 0.0
    %357 = vmatpush.msra.mxu0 0.0
    %358 = vmatpush.msra.mxu0 0.0
    %359 = vmatpush.msra.mxu0 0.0
    %360 = vmatpush.msra.mxu0 0.0
    %361 = vmatpush.msra.mxu0 0.0
    %362 = vmatpush.msra.mxu0 0.0
    %363 = vmatpush.msra.mxu0 0.0
    %364 = vmatpush.msra.mxu0 0.0
    %365 = vmatpush.msra.mxu0 0.0
    %366 = vmatpush.msra.mxu0 0.0
    %367 = vmatpush.msra.mxu0 %v95
    %368 = vmatpush.msra.mxu0 %v91
    %369 = vmatpush.msra.mxu0 %v87
    %370 = vmatpush.msra.mxu0 %v83
    %371 = vmatmul.f32.gmra.mxu0 %v294
    %v372 = vpop.f32.mrf.mxu0
    %v373 = vadd.f32 0.0, %v372
    %374 = vmatmul.f32.gmra.mxu0 %v333
    %v375 = vpop.f32.mrf.mxu0
    %v376 = vadd.f32 0.0, %v375
    %377 = vdwg.mxu0
    %v378 = vrcp.pop %v373
    %v379 = vmul.f32 %v373, %v378
    %v380 = vsub.f32 1.0, %v379
    %v381 = vmul.f32 %v378, %v380
    %v382 = vadd.f32 %v378, %v381
    %vm383 = vweird.f32 %v373
    %vm384 = vweird.f32 %v378
    %vm385 = vmor %vm383, %vm384
    %v386 = vsel %vm385, %v378, %v382
    %v387 = vand.u32 2147483647, %v373
    %vm388 = vcmp.eq.f32.partialorder %v387, 8.507059e+37
    %v389 = vand.u32 %v373, 2147483648
    %v390 = vor.u32 1.1754944e-38, %v389
    %v391 = vsel %vm388, %v390, %v386
    %v392 = vrcp.pop %v376
    %v393 = vmul.f32 %v376, %v392
    %v394 = vsub.f32 1.0, %v393
    %v395 = vmul.f32 %v392, %v394
    %v396 = vadd.f32 %v392, %v395
    %vm397 = vweird.f32 %v376
    %vm398 = vweird.f32 %v392
    %vm399 = vmor %vm397, %vm398
    %v400 = vsel %vm399, %v392, %v396
    %v401 = vand.u32 2147483647, %v376
    %vm402 = vcmp.eq.f32.partialorder %v401, 8.507059e+37
    %v403 = vand.u32 %v376, 2147483648
    %v404 = vor.u32 1.1754944e-38, %v403
    %v405 = vsel %vm402, %v404, %v400
    %v406 = vmul.f32 %v314, %v391
    %v407 = vmul.f32 %v353, %v405
    %412 = vrot.lane.b32.xlu0 %v38, 32
    %v413 = vpop.permute.xlu0 %412
    %414 = vrot.lane.b32.xlu0 %v39, 32
    %v415 = vpop.permute.xlu0 %414
    %416 = vrot.lane.b32.xlu0 %v40, 32
    %v417 = vpop.permute.xlu0 %416
    %418 = vrot.lane.b32.xlu0 %v41, 32
    %v419 = vpop.permute.xlu0 %418
    %424 = vrot.lane.b32.xlu0 %v44, 32
    %v425 = vpop.permute.xlu0 %424
    %v428 = vsel %vm46, %v406, 0
    %v431 = vsel %vm46, %v407, 0
    %433 = vmatpush.msra.mxu0 0.0
    %434 = vmatpush.msra.mxu0 0.0
    %435 = vmatpush.msra.mxu0 0.0
    %436 = vmatpush.msra.mxu0 0.0
    %437 = vmatpush.msra.mxu0 0.0
    %438 = vmatpush.msra.mxu0 0.0
    %439 = vmatpush.msra.mxu0 0.0
    %440 = vmatpush.msra.mxu0 0.0
    %441 = vmatpush.msra.mxu0 0.0
    %442 = vmatpush.msra.mxu0 0.0
    %443 = vmatpush.msra.mxu0 0.0
    %444 = vmatpush.msra.mxu0 0.0
    %445 = vmatpush.msra.mxu0 %v419
    %446 = vmatpush.msra.mxu0 %v417
    %447 = vmatpush.msra.mxu0 %v415
    %448 = vmatpush.msra.mxu0 %v413
    %449 = vmatmul.f32.gmra.mxu0 %v428
    %v450 = vpop.f32.mrf.mxu0
    %v451 = vadd.f32 %v425, %v450
    %452 = vmatmul.f32.gmra.mxu0 %v431
    %v453 = vpop.f32.mrf.mxu0
    %v454 = vadd.f32 %v425, %v453
    %455 = vdwg.mxu0
    %v456 = vadd.f32 %v451, %v36
    %v457 = vadd.f32 %v454, %v37
    %v458 = vsel %vm46, %v456, 0.0
    %459 = vadd.xlane.f32.xlu0 %v458
    %v460 = vpop.xlane.xlu0 %459
    %v461 = vsel %vm46, %v457, 0.0
    %462 = vadd.xlane.f32.xlu0 %v461
    %v463 = vpop.xlane.xlu0 %462
    %v464 = vrcp.pop 32.0
    %v465 = vmul.f32 32.0, %v464
    %v466 = vsub.f32 1.0, %v465
    %v467 = vmul.f32 %v464, %v466
    %v468 = vadd.f32 %v464, %v467
    %vm469 = vweird.f32 %v464
    %v470 = vsel %vm469, %v464, %v468
    %v471 = vmul.f32 %v460, %v470
    %v472 = vmul.f32 %v463, %v470
    %v473 = vsub.f32 %v456, %v471
    %v474 = vsub.f32 %v457, %v472
    %v475 = vmul.f32 %v473, %v473
    %v476 = vmul.f32 %v474, %v474
    %v477 = vsel %vm46, %v475, 0.0
    %478 = vadd.xlane.f32.xlu0 %v477
    %v479 = vpop.xlane.xlu0 %478
    %v480 = vsel %vm46, %v476, 0.0
    %481 = vadd.xlane.f32.xlu0 %v480
    %v482 = vpop.xlane.xlu0 %481
    %v483 = vmul.f32 %v479, %v470
    %v484 = vmul.f32 %v482, %v470
    %v485 = vadd.f32 %v483, 1e-05
    %v486 = vadd.f32 %v484, 1e-05
    %v487 = vrsqrt.pop %v485
    %v488 = vmul.f32 %v487, %v485
    %v489 = vmul.f32 %v488, %v487
    %v490 = vmul.f32 0.5, %v489
    %v491 = vsub.f32 1.5, %v490
    %v492 = vmul.f32 %v487, %v491
    %vm493 = vweird.f32 %v485
    %vm494 = vweird.f32 %v487
    %vm495 = vmor %vm493, %vm494
    %v496 = vsel %vm495, %v487, %v492
    %v497 = vrsqrt.pop %v486
    %v498 = vmul.f32 %v497, %v486
    %v499 = vmul.f32 %v498, %v497
    %v500 = vmul.f32 0.5, %v499
    %v501 = vsub.f32 1.5, %v500
    %v502 = vmul.f32 %v497, %v501
    %vm503 = vweird.f32 %v486
    %vm504 = vweird.f32 %v497
    %vm505 = vmor %vm503, %vm504
    %v506 = vsel %vm505, %v497, %v502
    %v507 = vmul.f32 %v473, %v496
    %v508 = vmul.f32 %v474, %v506
    %v509 = vld [vmem:[%s4] sm:$0xff]
    %v510 = vld [vmem:[%s4 + $0x8] sm:$0xff]
    %v511 = vld [vmem:[%s4 + $0x10] sm:$0xff]
    %v512 = vld [vmem:[%s4 + $0x18] sm:$0xff]
    %v513 = vld [vmem:[%s5] sm:$0x1]
    %v515 = vperm.slane %v513, 0
    %v518 = vsel %vm46, %v507, 0
    %v521 = vsel %vm46, %v508, 0
    %523 = vmatpush.msra.mxu0 0.0
    %524 = vmatpush.msra.mxu0 0.0
    %525 = vmatpush.msra.mxu0 0.0
    %526 = vmatpush.msra.mxu0 0.0
    %527 = vmatpush.msra.mxu0 0.0
    %528 = vmatpush.msra.mxu0 0.0
    %529 = vmatpush.msra.mxu0 0.0
    %530 = vmatpush.msra.mxu0 0.0
    %531 = vmatpush.msra.mxu0 0.0
    %532 = vmatpush.msra.mxu0 0.0
    %533 = vmatpush.msra.mxu0 0.0
    %534 = vmatpush.msra.mxu0 0.0
    %535 = vmatpush.msra.mxu0 %v512
    %536 = vmatpush.msra.mxu0 %v511
    %537 = vmatpush.msra.mxu0 %v510
    %538 = vmatpush.msra.mxu0 %v509
    %539 = vmatmul.f32.gmra.mxu0 %v518
    %v540 = vpop.f32.mrf.mxu0
    %v541 = vadd.f32 %v515, %v540
    %542 = vmatmul.f32.gmra.mxu0 %v521
    %v543 = vpop.f32.mrf.mxu0
    %v544 = vadd.f32 %v515, %v543
    %545 = vdwg.mxu0
    %v546 = vmax.f32 %v541, 0.0
    %v547 = vmax.f32 %v544, 0.0
    %v548 = vld [vmem:[%s6] sm:$0xff]
    %v549 = vld [vmem:[%s6 + $0x8] sm:$0xff]
    %v550 = vld [vmem:[%s6 + $0x10] sm:$0xff]
    %v551 = vld [vmem:[%s6 + $0x18] sm:$0xff]
    %v552 = vld [vmem:[%s6 + $0x20] sm:$0xff]
    %v553 = vld [vmem:[%s6 + $0x28] sm:$0xff]
    %v554 = vld [vmem:[%s6 + $0x30] sm:$0xff]
    %v555 = vld [vmem:[%s6 + $0x38] sm:$0xff]
    %v556 = vld [vmem:[%s6 + $0x40] sm:$0xff]
    %v557 = vld [vmem:[%s6 + $0x48] sm:$0xff]
    %v558 = vld [vmem:[%s6 + $0x50] sm:$0xff]
    %v559 = vld [vmem:[%s6 + $0x58] sm:$0xff]
    %v560 = vld [vmem:[%s6 + $0x60] sm:$0xff]
    %v561 = vld [vmem:[%s6 + $0x68] sm:$0xff]
    %v562 = vld [vmem:[%s6 + $0x70] sm:$0xff]
    %v563 = vld [vmem:[%s6 + $0x78] sm:$0xff]
    %v564 = vld [vmem:[%s7] sm:$0x1]
    %v566 = vperm.slane %v564, 0
    %568 = vmatpush.msra.mxu0 %v563
    %569 = vmatpush.msra.mxu0 %v562
    %570 = vmatpush.msra.mxu0 %v561
    %571 = vmatpush.msra.mxu0 %v560
    %572 = vmatpush.msra.mxu0 %v559
    %573 = vmatpush.msra.mxu0 %v558
    %574 = vmatpush.msra.mxu0 %v557
    %575 = vmatpush.msra.mxu0 %v556
    %576 = vmatpush.msra.mxu0 %v555
    %577 = vmatpush.msra.mxu0 %v554
    %578 = vmatpush.msra.mxu0 %v553
    %579 = vmatpush.msra.mxu0 %v552
    %580 = vmatpush.msra.mxu0 %v551
    %581 = vmatpush.msra.mxu0 %v550
    %582 = vmatpush.msra.mxu0 %v549
    %583 = vmatpush.msra.mxu0 %v548
    %584 = vmatmul.f32.gmra.mxu0 %v546
    %v585 = vpop.f32.mrf.mxu0
    %v586 = vadd.f32 %v566, %v585
    %587 = vmatmul.f32.gmra.mxu0 %v547
    %v588 = vpop.f32.mrf.mxu0
    %v589 = vadd.f32 %v566, %v588
    %590 = vdwg.mxu0
    %v591 = vadd.f32 %v36, %v586
    %v592 = vadd.f32 %v37, %v589
    %v593 = vsel %vm46, %v591, 0.0
    %594 = vadd.xlane.f32.xlu0 %v593
    %v595 = vpop.xlane.xlu0 %594
    %v596 = vsel %vm46, %v592, 0.0
    %597 = vadd.xlane.f32.xlu0 %v596
    %v598 = vpop.xlane.xlu0 %597
    %v599 = vmul.f32 %v595, %v470
    %v600 = vmul.f32 %v598, %v470
    %v601 = vsub.f32 %v591, %v599
    %v602 = vsub.f32 %v592, %v600
    %v603 = vmul.f32 %v601, %v601
    %v604 = vmul.f32 %v602, %v602
    %v605 = vsel %vm46, %v603, 0.0
    %606 = vadd.xlane.f32.xlu0 %v605
    %v607 = vpop.xlane.xlu0 %606
    %v608 = vsel %vm46, %v604, 0.0
    %609 = vadd.xlane.f32.xlu0 %v608
    %v610 = vpop.xlane.xlu0 %609
    %v611 = vmul.f32 %v607, %v470
    %v612 = vmul.f32 %v610, %v470
    %v613 = vadd.f32 %v611, 1e-05
    %v614 = vadd.f32 %v612, 1e-05
    %v615 = vrsqrt.pop %v613
    %v616 = vmul.f32 %v615, %v613
    %v617 = vmul.f32 %v616, %v615
    %v618 = vmul.f32 0.5, %v617
    %v619 = vsub.f32 1.5, %v618
    %v620 = vmul.f32 %v615, %v619
    %vm621 = vweird.f32 %v613
    %vm622 = vweird.f32 %v615
    %vm623 = vmor %vm621, %vm622
    %v624 = vsel %vm623, %v615, %v620
    %v625 = vrsqrt.pop %v614
    %v626 = vmul.f32 %v625, %v614
    %v627 = vmul.f32 %v626, %v625
    %v628 = vmul.f32 0.5, %v627
    %v629 = vsub.f32 1.5, %v628
    %v630 = vmul.f32 %v625, %v629
    %vm631 = vweird.f32 %v614
    %vm632 = vweird.f32 %v625
    %vm633 = vmor %vm631, %vm632
    %v634 = vsel %vm633, %v625, %v630
    %v635 = vmul.f32 %v601, %v624
    %v636 = vmul.f32 %v602, %v634
    %637 = vrot.lane.b32.xlu0 %v406, 32
    %v638 = vpop.permute.xlu0 %637
    %639 = vrot.lane.b32.xlu0 %v407, 32
    %v640 = vpop.permute.xlu0 %639
    %v643 = vsel %vm46, %v635, %v638
    %v644 = vsel %vm46, %v636, %v640
    %vm645 = vcmask 523264
    %646 = vst.msk [vmem:[#allocation4] sm:$0xff] %vm645, %v643
    %647 = vst.msk [vmem:[#allocation4 + $0x8] sm:$0xff] %vm645, %v644
    // Predicated region
    $region30: #{tpu_custom_call.1} parent=1 // pred_check
      _
    $region31: #{tpu_custom_call.1} parent=1 // pred_check_branch
      %649 = sbr.rel (0) target = $region33
    $region32: #{tpu_custom_call.1} parent=1 // pred_region
      %651 = vsyncadd [#allocation5], 0
      %s652 = sshll.u32 [#allocation4], 4
      %s653 = int_to_ptr.vmem [resolvable:$true] %s652
      %s654 = sshll.u32 %s8, 4
      %s655 = int_to_ptr.hbm [resolvable:$true] %s654
      %660 = dma.vmem_to_hbm [thread:$0]  %s653, 256, %s655, [#allocation5], 128, 128, 8
    $region33: #{tpu_custom_call.1} parent=1 // pred_fallthru
      _
    // Predicated region
    $region34: #{tpu_custom_call.1} parent=1 // pred_check
      _
    $region35: #{tpu_custom_call.1} parent=1 // pred_check_branch
      %662 = sbr.rel (0) target = $region37
    $region36: #{tpu_custom_call.1} parent=1 // pred_region
      %664 = dma.done [#allocation5], 256
    $region37: #{tpu_custom_call.1} parent=1 // pred_fallthru
      _
    %665 = vsyncpa [#allocation5], 1

</llo_original>
